<compile_context>
chip_gen: v6e
topology: v6e:2x2x1
jax: 0.10.0
libtpu: 0.0.40
codegen_flags: <defaults>
</compile_context>

<pallas_src>
import jax
import jax.numpy as jnp
from jax import lax
from jax.experimental import pallas as pl
from jax.experimental.pallas import tpu as pltpu


# ---------------------------------------------------------------------------
# parameter helpers (match torch softplus / invsoftplus init in __init__)
# ---------------------------------------------------------------------------
def softplus(x):
    return jax.nn.softplus(x)   # numerically stable log(1+exp(x))


def invsoftplus(y):
    return jnp.log(jnp.expm1(y))


def _round_up(x, m):
    return ((x + m - 1) // m) * m


def _cdiv(a, b):
    return -(-a // b)


def _pick_tile(n, t_max, align):
    """Balanced, aligned tile size <= t_max that minimizes pad waste."""
    n_al = _round_up(max(int(n), 1), align)
    t_max = _round_up(int(t_max), align)
    nblocks = _cdiv(n_al, t_max)
    return min(_round_up(_cdiv(n_al, nblocks), align), t_max)


def _vmem_limit(footprint_bytes):
    """Only raise the scoped-VMEM limit when the per-step working set needs it."""
    if footprint_bytes <= (12 << 20):      # fits the v5e 16 MiB default with slack
        return None
    return min(max(2 * footprint_bytes, 32 << 20), 64 << 20)   # cap <= v7x physical


# ---------------------------------------------------------------------------
# Pallas kernels
# ---------------------------------------------------------------------------
def _rbf_kernel(a_ref, bt_ref, ra_ref, rb_ref, o_ref):
    """out = exp(a @ bt + ra + rb) with ra = -0.5||x/ls||^2 + log(var),
    rb = -0.5||x2/ls||^2 precomputed per row/col in the wrapper.
    bt is the lane-dense (D_in, tn) right-hand side."""
    d = lax.dot_general(
        a_ref[...], bt_ref[...],
        dimension_numbers=(((1,), (0,)), ((), ())),   # canonical (tm,K)x(K,tn)
        preferred_element_type=jnp.float32)
    o_ref[...] = jnp.exp(d + ra_ref[...] + rb_ref[...]).astype(o_ref.dtype)


def _rbf_dimwise_kernel(a_ref, bt_ref, ra_ref, rb_ref, o_ref):
    """Same as above; leading grid axis selects the output dimension d.
    The per-d 1/ls^2 scaling is folded into a, so bt (X2^T) is shared over d."""
    d = lax.dot_general(
        a_ref[0], bt_ref[...],
        dimension_numbers=(((1,), (0,)), ((), ())),
        preferred_element_type=jnp.float32)
    o_ref[0] = jnp.exp(d + ra_ref[0] + rb_ref[0]).astype(o_ref.dtype)


# ---------------------------------------------------------------------------
# wrappers
# ---------------------------------------------------------------------------
def rbf_forward(X, X2, lengthscales, variance, *, tm_max=512, tn_max=1024,
                out_dtype=jnp.float32):
    """Non-dimwise K(X, X2) -> (N, M)."""
    N, D_in = X.shape
    M = X2.shape[0]
    X = X.astype(jnp.float32)
    X2 = X2.astype(jnp.float32)

    inv_ls = (1.0 / lengthscales.astype(jnp.float32)).reshape(1, D_in)
    a = X * inv_ls                                         # (N, D_in)
    b = X2 * inv_ls                                        # (M, D_in)
    log_var = jnp.log(variance.astype(jnp.float32)).reshape(())
    ra = -0.5 * jnp.sum(a * a, axis=1, keepdims=True) + log_var   # (N, 1)
    rb = (-0.5 * jnp.sum(b * b, axis=1, keepdims=True)).T         # (1, M)
    bt = b.T                                                       # (D_in, M)

    # balanced, aligned tiles: sublane-aligned rows, lane-dense columns
    tm = _pick_tile(N, tm_max, 8)
    tn = _pick_tile(M, tn_max, 128)

    # v7x megacore: ensure >= 2 parallel blocks when possible (prefer splitting
    # N — sublane granularity is finer so it adds no pad waste)
    if _cdiv(N, tm) * _cdiv(M, tn) == 1:
        if N >= 16:
            tm = _round_up(_cdiv(_round_up(N, 8), 2), 8)
        elif M > 128:
            tn = _round_up(_cdiv(M, 2), 128)

    N_p = _round_up(N, tm)
    M_p = _round_up(M, tn)
    if N_p != N:
        a = jnp.pad(a, ((0, N_p - N), (0, 0)))
        ra = jnp.pad(ra, ((0, N_p - N), (0, 0)))
    if M_p != M:
        bt = jnp.pad(bt, ((0, 0), (0, M_p - M)))
        rb = jnp.pad(rb, ((0, 0), (0, M_p - M)))

    out_itemsize = jnp.dtype(out_dtype).itemsize
    cost = pl.CostEstimate(
        flops=2 * N_p * M_p * D_in,
        transcendentals=N_p * M_p,
        bytes_accessed=(N_p * M_p * out_itemsize
                        + 4 * (N_p * D_in + D_in * M_p + N_p + M_p)))

    footprint = 2 * 4 * (tm * tn + tm * D_in + D_in * tn + tm + tn)

    out = pl.pallas_call(
        _rbf_kernel,
        out_shape=jax.ShapeDtypeStruct((N_p, M_p), out_dtype),
        grid=(N_p // tm, M_p // tn),
        in_specs=[
            pl.BlockSpec((tm, D_in), lambda i, j: (i, 0)),
            pl.BlockSpec((D_in, tn), lambda i, j: (0, j)),
            pl.BlockSpec((tm, 1), lambda i, j: (i, 0)),
            pl.BlockSpec((1, tn), lambda i, j: (0, j)),
        ],
        out_specs=pl.BlockSpec((tm, tn), lambda i, j: (i, j)),
        compiler_params=pltpu.CompilerParams(
            dimension_semantics=("parallel", "parallel"),
            vmem_limit_bytes=_vmem_limit(footprint)),
        cost_estimate=cost,
    )(a, bt, ra, rb)
    return out[:N, :M]


def rbf_forward_dimwise(X, X2, lengthscales, variance, *, tm_max=512, tn_max=1024,
                        out_dtype=jnp.float32):
    """Dimwise K(X, X2) -> (D_out, N, M)."""
    N, D_in = X.shape
    M = X2.shape[0]
    D_out = lengthscales.shape[0]
    X = X.astype(jnp.float32)
    X2 = X2.astype(jnp.float32)

    ls = lengthscales.astype(jnp.float32)                 # (D_out, D_in)
    inv_ls2 = 1.0 / (ls * ls)

    # Fold 1/ls^2 into the LHS only; X2^T is a single shared (D_in, M) slab.
    a = X[None] * inv_ls2[:, None, :]                     # (D_out, N, D_in)
    log_var = jnp.log(variance.astype(jnp.float32))[:, None, None]
    ra = (-0.5 * jnp.einsum('nk,dk->dn', X * X, inv_ls2))[:, :, None] + log_var
    rb = (-0.5 * jnp.einsum('mk,dk->dm', X2 * X2, inv_ls2))[:, None, :]
    bt = X2.T                                             # (D_in, M)

    tm = _pick_tile(N, tm_max, 8)
    tn = _pick_tile(M, tn_max, 128)

    # v7x megacore: D_out is already a parallel axis; only split when it is 1
    if D_out * _cdiv(N, tm) * _cdiv(M, tn) == 1:
        if N >= 16:
            tm = _round_up(_cdiv(_round_up(N, 8), 2), 8)
        elif M > 128:
            tn = _round_up(_cdiv(M, 2), 128)

    N_p = _round_up(N, tm)
    M_p = _round_up(M, tn)
    if N_p != N:
        a = jnp.pad(a, ((0, 0), (0, N_p - N), (0, 0)))
        ra = jnp.pad(ra, ((0, 0), (0, N_p - N), (0, 0)))
    if M_p != M:
        bt = jnp.pad(bt, ((0, 0), (0, M_p - M)))
        rb = jnp.pad(rb, ((0, 0), (0, 0), (0, M_p - M)))

    out_itemsize = jnp.dtype(out_dtype).itemsize
    cost = pl.CostEstimate(
        flops=2 * D_out * N_p * M_p * D_in,
        transcendentals=D_out * N_p * M_p,
        bytes_accessed=(D_out * N_p * M_p * out_itemsize
                        + 4 * (D_out * N_p * D_in + D_in * M_p
                               + D_out * N_p + D_out * M_p)))

    footprint = 2 * 4 * (tm * tn + tm * D_in + D_in * tn + tm + tn)

    out = pl.pallas_call(
        _rbf_dimwise_kernel,
        out_shape=jax.ShapeDtypeStruct((D_out, N_p, M_p), out_dtype),
        grid=(D_out, N_p // tm, M_p // tn),
        in_specs=[
            pl.BlockSpec((1, tm, D_in), lambda d, i, j: (d, i, 0)),
            pl.BlockSpec((D_in, tn), lambda d, i, j: (0, j)),
            pl.BlockSpec((1, tm, 1), lambda d, i, j: (d, i, 0)),
            pl.BlockSpec((1, 1, tn), lambda d, i, j: (d, 0, j)),
        ],
        out_specs=pl.BlockSpec((1, tm, tn), lambda d, i, j: (d, i, j)),
        compiler_params=pltpu.CompilerParams(
            dimension_semantics=("parallel", "parallel", "parallel"),
            vmem_limit_bytes=_vmem_limit(footprint)),
        cost_estimate=cost,
    )(a, bt, ra, rb)
    return out[:, :N, :M]


class RBF:
    """JAX port of the torch RBF module (forward == K(X, X2))."""

    def __init__(self, D_in, D_out=None, dimwise=False):
        self.D_in = D_in
        self.D_out = D_in if D_out is None else D_out
        self.dimwise = dimwise
        ls_shape = (self.D_out, self.D_in) if dimwise else (self.D_in,)
        var_shape = (self.D_out,) if dimwise else (1,)
        # deterministic init exactly as torch _initialize():
        self.unconstrained_lengthscales = jnp.full(
            ls_shape, invsoftplus(jnp.float32(0.2)), dtype=jnp.float32)
        self.unconstrained_variance = jnp.full(
            var_shape, invsoftplus(jnp.float32(0.1)), dtype=jnp.float32)

    @property
    def lengthscales(self):
        return softplus(self.unconstrained_lengthscales)

    @property
    def variance(self):
        return softplus(self.unconstrained_variance)

    def __call__(self, X, X2=None):
        # TODO(synk): a triangular-tile variant for the symmetric X2=None case
        # (skip j<i tiles + mirror) would halve EUP/MXU work on v7x.
        X2 = X if X2 is None else X2
        if self.dimwise:
            return rbf_forward_dimwise(X, X2, self.lengthscales, self.variance)
        return rbf_forward(X, X2, self.lengthscales, self.variance)


# ---------------------------------------------------------------------------
# pure-JAX reference for validation
# ---------------------------------------------------------------------------
def _ref_forward(X, X2, lengthscales, variance, dimwise):
    if dimwise:
        Xl = X[None] / lengthscales[:, None, :]      # (D_out, N, D)
        X2l = X2[None] / lengthscales[:, None, :]    # (D_out, M, D)
        Xs = jnp.sum(Xl ** 2, axis=2)
        X2s = jnp.sum(X2l ** 2, axis=2)
        sq = (-2.0 * jnp.einsum('dnk,dmk->dnm', Xl, X2l)
              + Xs[:, :, None] + X2s[:, None, :])
        return variance[:, None, None] * jnp.exp(-0.5 * sq)
    Xl = X / lengthscales
    X2l = X2 / lengthscales
    Xs = jnp.sum(Xl ** 2, axis=1)
    X2s = jnp.sum(X2l ** 2, axis=1)
    sq = -2.0 * (Xl @ X2l.T) + Xs[:, None] + X2s[None, :]
    return variance * jnp.exp(-0.5 * sq)


if __name__ == "__main__":
    key = jax.random.PRNGKey(0)
    kx, kx2, kx3, kx4, kx5, kx6 = jax.random.split(key, 6)

    # --- small aligned case --------------------------------------------------
    N, M, D_in = 16, 16, 8
    X = jax.random.normal(kx, (N, D_in), dtype=jnp.float32)
    X2 = jax.random.normal(kx2, (M, D_in), dtype=jnp.float32)

    rbf = RBF(D_in)
    out = jax.block_until_ready(rbf(X, X2))
    ref = _ref_forward(X, X2, rbf.lengthscales, rbf.variance, dimwise=False)
    assert out.shape == (N, M)
    assert jnp.allclose(out, ref, atol=1e-5, rtol=1e-5)

    # K(X) with X2=None path
    out_self = jax.block_until_ready(rbf(X))
    ref_self = _ref_forward(X, X, rbf.lengthscales, rbf.variance, dimwise=False)
    assert jnp.allclose(out_self, ref_self, atol=1e-5, rtol=1e-5)

    # dimwise forward: K(X, X2) -> (D_out, N, M)
    rbf_dw = RBF(D_in, D_out=4, dimwise=True)
    out_dw = jax.block_until_ready(rbf_dw(X, X2))
    ref_dw = _ref_forward(X, X2, rbf_dw.lengthscales, rbf_dw.variance, dimwise=True)
    assert out_dw.shape == (4, N, M)
    assert jnp.allclose(out_dw, ref_dw, atol=1e-5, rtol=1e-5)

    # --- ragged (non-aligned) case exercising the padding path ---------------
    N2, M2, D2 = 40, 24, 5
    Xa = jax.random.normal(kx3, (N2, D2), dtype=jnp.float32)
    Xb = jax.random.normal(kx4, (M2, D2), dtype=jnp.float32)

    rbf_r = RBF(D2)
    out_r = jax.block_until_ready(rbf_r(Xa, Xb))
    ref_r = _ref_forward(Xa, Xb, rbf_r.lengthscales, rbf_r.variance, dimwise=False)
    assert out_r.shape == (N2, M2)
    assert jnp.allclose(out_r, ref_r, atol=1e-5, rtol=1e-5)

    rbf_r_dw = RBF(D2, D_out=3, dimwise=True)
    out_r_dw = jax.block_until_ready(rbf_r_dw(Xa, Xb))
    ref_r_dw = _ref_forward(Xa, Xb, rbf_r_dw.lengthscales, rbf_r_dw.variance,
                            dimwise=True)
    assert out_r_dw.shape == (3, N2, M2)
    assert jnp.allclose(out_r_dw, ref_r_dw, atol=1e-5, rtol=1e-5)

    # --- moderate case exercising balanced tiling + megacore split -----------
    N3, M3, D3 = 300, 260, 6
    Xc = jax.random.normal(kx5, (N3, D3), dtype=jnp.float32)
    Xd = jax.random.normal(kx6, (M3, D3), dtype=jnp.float32)
    rbf_m = RBF(D3)
    out_m = jax.block_until_ready(rbf_m(Xc, Xd))
    ref_m = _ref_forward(Xc, Xd, rbf_m.lengthscales, rbf_m.variance, dimwise=False)
    assert out_m.shape == (N3, M3)
    assert jnp.allclose(out_m, ref_m, atol=1e-5, rtol=1e-5)

    # TODO(synk): sample_freq / build_cache / rff_forward use host-side RNG and
    # compute_nu uses cholesky/triangular solves; only the module `forward`
    # (K(X, X2)) hot path is implemented as Pallas kernels here.
    print("KERNEL_OK")
</pallas_src>

<mosaic_0001>
module attributes {stable_mosaic.version = 11 : i64} {
  func.func @_rbf_kernel(%arg0: i32, %arg1: i32, %arg2: memref<8x8xf32, #tpu.memory_space<vmem>>, %arg3: memref<8x128xf32, #tpu.memory_space<vmem>>, %arg4: memref<8x1xf32, #tpu.memory_space<vmem>>, %arg5: memref<1x128xf32, #tpu.memory_space<vmem>>, %arg6: memref<8x128xf32, #tpu.memory_space<vmem>>) attributes {dimension_semantics = [#tpu.dimension_semantics<parallel>, #tpu.dimension_semantics<parallel>], iteration_bounds = array<i64: 2, 1>, scalar_prefetch = 0 : i64, scratch_operands = 0 : i64, tpu.core_type = #tpu.core_type<tc>, window_params = [{transform_indices = @transform_0, window_bounds = array<i64: 8, 8>}, {transform_indices = @transform_1, window_bounds = array<i64: 8, 128>}, {transform_indices = @transform_2, window_bounds = array<i64: 8, 1>}, {transform_indices = @transform_3, window_bounds = array<i64: 1, 128>}, {transform_indices = @transform_4, window_bounds = array<i64: 8, 128>}]} {
    %c0 = arith.constant 0 : index
    %c0_0 = arith.constant 0 : index
    %0 = vector.load %arg2[%c0, %c0_0] : memref<8x8xf32, #tpu.memory_space<vmem>>, vector<8x8xf32>
    %c0_1 = arith.constant 0 : index
    %c0_2 = arith.constant 0 : index
    %1 = vector.load %arg3[%c0_1, %c0_2] : memref<8x128xf32, #tpu.memory_space<vmem>>, vector<8x128xf32>
    %cst = arith.constant dense<0.000000e+00> : vector<8x128xf32>
    %2 = tpu.matmul %0, %1, %cst {dimension_numbers = #tpu.dot_dimension_numbers<[1], [0], [0], [1], [0, 0, 1, 1], [], []>} : vector<8x8xf32>, vector<8x128xf32>, vector<8x128xf32> -> vector<8x128xf32>
    %c0_3 = arith.constant 0 : index
    %c0_4 = arith.constant 0 : index
    %3 = vector.load %arg4[%c0_3, %c0_4] : memref<8x1xf32, #tpu.memory_space<vmem>>, vector<8x1xf32>
    %4 = vector.broadcast %3 : vector<8x1xf32> to vector<8x128xf32>
    %5 = arith.addf %2, %4 : vector<8x128xf32>
    %c0_5 = arith.constant 0 : index
    %c0_6 = arith.constant 0 : index
    %6 = vector.load %arg5[%c0_5, %c0_6] : memref<1x128xf32, #tpu.memory_space<vmem>>, vector<1x128xf32>
    %7 = vector.broadcast %6 : vector<1x128xf32> to vector<8x128xf32>
    %8 = arith.addf %5, %7 : vector<8x128xf32>
    %9 = math.exp %8 : vector<8x128xf32>
    %c0_7 = arith.constant 0 : index
    %c0_8 = arith.constant 0 : index
    %10 = vector.load %arg6[%c0_7, %c0_8] : memref<8x128xf32, #tpu.memory_space<vmem>>, vector<8x128xf32>
    tpu.vector_store %arg6[%c0_7, %c0_8], %9 {strides = array<i32>} : memref<8x128xf32, #tpu.memory_space<vmem>>, vector<8x128xf32>,
    return
  }
  func.func @transform_0(%arg0: i32, %arg1: i32) -> (i32, i32) {
    %c0_i32 = arith.constant 0 : i32
    %c0_i32_0 = arith.constant 0 : i32
    return %arg0, %c0_i32 : i32, i32
  }
  func.func @transform_1(%arg0: i32, %arg1: i32) -> (i32, i32) {
    %c0_i32 = arith.constant 0 : i32
    %c0_i32_0 = arith.constant 0 : i32
    return %c0_i32, %arg1 : i32, i32
  }
  func.func @transform_2(%arg0: i32, %arg1: i32) -> (i32, i32) {
    %c0_i32 = arith.constant 0 : i32
    %c0_i32_0 = arith.constant 0 : i32
    return %arg0, %c0_i32 : i32, i32
  }
  func.func @transform_3(%arg0: i32, %arg1: i32) -> (i32, i32) {
    %c0_i32 = arith.constant 0 : i32
    %c0_i32_0 = arith.constant 0 : i32
    return %c0_i32, %arg1 : i32, i32
  }
  func.func @transform_4(%arg0: i32, %arg1: i32) -> (i32, i32) {
    %c0_i32 = arith.constant 0 : i32
    return %arg0, %arg1 : i32, i32
  }
}

</mosaic_0001>

<llo_original>
// kernel: tpu_custom_call.1
$region0: #{tpu_custom_call.1}
  #allocation0 [shape = 'u32[]', space=smem, size = 0x4, offset = 0x4, fixed_abs, tag = 'smem constant byte address 0x4 - core index']
  #allocation1 [shape = 'u32[144,128]{1,0:T(1,128)}', space=vmem, size = 0x12000, scoped, tag = 'internal scratch']
  %s0 = inlined_call_operand.vmem [shape: f32[16,8], index: 0, kind: input, shape index: {}]
  %s1 = inlined_call_operand.vmem [shape: f32[8,128], index: 1, kind: input, shape index: {}]
  %s2 = inlined_call_operand.vmem [shape: f32[16,1], index: 2, kind: input, shape index: {}]
  %s3 = inlined_call_operand.vmem [shape: f32[1,128], index: 3, kind: input, shape index: {}]
  %s4 = inlined_call_operand.hbm [shape: f32[16,128], index: 4, kind: output, shape index: {}]
  %s5 = sld [smem:[#allocation0]]
  $region49: #{tpu_custom_call.1} parent=0
    _
  %s7 = ssub.s32 1, %s5
  %s8 = scalar_select 0, %s7, %s5
  $region1: #{tpu_custom_call.1} parent=0
    #allocation2 [shape = 'u8[8192]{0}', space=vmem, size = 0x2000, scoped, tag = 'output window, operand 0']
    #allocation3 [shape = 's32[2]{0}', space=sflag, size = 0x8, scoped, tag = 'scoped memory for tpu_custom_call.1']
    %9 = vsyncpa [#allocation3], 0
    %s10 = scalar_lea.sflag [#allocation3], 1
    %11 = vsyncpa %s10, 0
    loop: start=0, step=1, limit=4
    $region2: #{tpu_custom_call.1} parent=1 // loop_pre_header
      _
    $region3: #{tpu_custom_call.1} parent=1 // loop_header
      %s13 = sphi 0, %s17
      %p14 = scmp.ge.s32.totalorder %s13, 4
      %s20 = sphi 0, %s32
      %s21 = sphi 0, %s28
      %s22 = sphi 0, %s20
      %s23 = sphi 0, %s21
      %s24 = sphi 0, %s22
      %s25 = sphi 0, %s23
      %s35 = sphi 0, %s37
      %s38 = sphi 0, %s35
      %s39 = sphi 0, %s38
      %s55 = sphi 0, %s39
      %s61 = sphi 0, %s63
      %s64 = sphi 0, %s61
      %s65 = sphi 0, %s64
      %s81 = sphi 0, %s65
      %s87 = sphi 0, %s89
      %s90 = sphi 0, %s87
      %s91 = sphi 0, %s90
      %s107 = sphi 0, %s91
      %s113 = sphi 0, %s115
      %s116 = sphi 0, %s113
      %s117 = sphi 0, %s116
      %s133 = sphi 0, %s117
      %s141 = sphi 0, %s143
      %s144 = sphi 0, %s141
      %s145 = sphi 0, %s144
      %s161 = sphi 0, %s145
    $region4: #{tpu_custom_call.1} parent=1 // loop_header_branch
      %16 = sbr.rel (%p14) target = $region8
    $region5: #{tpu_custom_call.1} parent=1 // loop_body
      %s18 = ssub.s32 %s13, 1
      %s19 = ssub.s32 %s13, 2
      %s26 = sadd.s32 1, %s21
      %p27 = scmp.ge.s32.totalorder %s26, 1
      %s28 = scalar_select %p27, 0, %s26
      %s29 = sadd.s32 1, %s20
      %s30 = scalar_select %p27, %s29, %s20
      %p31 = scmp.ge.s32.totalorder %s30, 2
      %s32 = scalar_select %p31, 0, %s30
      %s33 = ssub.s32 %s20, %s32
      %p34 = scmp.eq.s32.totalorder %s33, 0
      %s36 = sadd.s32 %s35, 1
      %s37 = scalar_select %p34, %s35, %s36
      %p40 = pneg %p34
      %p41 = scmp.eq.s32.totalorder %s13, 1
      %p42 = por %p40, %p41
      %p43 = scmp.ne.s32.totalorder %s35, %s38
      %p44 = scmp.eq.s32.totalorder %s13, 0
      %p45 = por %p43, %p44
      %p46 = scmp.ne.s32.totalorder %s35, %s38
      %p47 = scmp.eq.s32.totalorder %s18, 1
      %p48 = por %p46, %p47
      %p49 = scmp.ne.s32.totalorder %s38, %s39
      %p50 = scmp.eq.s32.totalorder %s18, 0
      %p51 = por %p49, %p50
      %p52 = scmp.ne.s32.totalorder %s38, %s39
      %p53 = scmp.eq.s32.totalorder %s19, 1
      %p54 = por %p52, %p53
      %p56 = scmp.ne.s32.totalorder %s39, %s55
      %p57 = scmp.eq.s32.totalorder %s19, 0
      %p58 = por %p56, %p57
      %s59 = ssub.s32 %s21, %s28
      %p60 = scmp.eq.s32.totalorder %s59, 0
      %s62 = sadd.s32 %s61, 1
      %s63 = scalar_select %p60, %s61, %s62
      %p66 = pneg %p60
      %p67 = scmp.eq.s32.totalorder %s13, 1
      %p68 = por %p66, %p67
      %p69 = scmp.ne.s32.totalorder %s61, %s64
      %p70 = scmp.eq.s32.totalorder %s13, 0
      %p71 = por %p69, %p70
      %p72 = scmp.ne.s32.totalorder %s61, %s64
      %p73 = scmp.eq.s32.totalorder %s18, 1
      %p74 = por %p72, %p73
      %p75 = scmp.ne.s32.totalorder %s64, %s65
      %p76 = scmp.eq.s32.totalorder %s18, 0
      %p77 = por %p75, %p76
      %p78 = scmp.ne.s32.totalorder %s64, %s65
      %p79 = scmp.eq.s32.totalorder %s19, 1
      %p80 = por %p78, %p79
      %p82 = scmp.ne.s32.totalorder %s65, %s81
      %p83 = scmp.eq.s32.totalorder %s19, 0
      %p84 = por %p82, %p83
      %s85 = ssub.s32 %s20, %s32
      %p86 = scmp.eq.s32.totalorder %s85, 0
      %s88 = sadd.s32 %s87, 1
      %s89 = scalar_select %p86, %s87, %s88
      %p92 = pneg %p86
      %p93 = scmp.eq.s32.totalorder %s13, 1
      %p94 = por %p92, %p93
      %p95 = scmp.ne.s32.totalorder %s87, %s90
      %p96 = scmp.eq.s32.totalorder %s13, 0
      %p97 = por %p95, %p96
      %p98 = scmp.ne.s32.totalorder %s87, %s90
      %p99 = scmp.eq.s32.totalorder %s18, 1
      %p100 = por %p98, %p99
      %p101 = scmp.ne.s32.totalorder %s90, %s91
      %p102 = scmp.eq.s32.totalorder %s18, 0
      %p103 = por %p101, %p102
      %p104 = scmp.ne.s32.totalorder %s90, %s91
      %p105 = scmp.eq.s32.totalorder %s19, 1
      %p106 = por %p104, %p105
      %p108 = scmp.ne.s32.totalorder %s91, %s107
      %p109 = scmp.eq.s32.totalorder %s19, 0
      %p110 = por %p108, %p109
      %s111 = ssub.s32 %s21, %s28
      %p112 = scmp.eq.s32.totalorder %s111, 0
      %s114 = sadd.s32 %s113, 1
      %s115 = scalar_select %p112, %s113, %s114
      %p118 = pneg %p112
      %p119 = scmp.eq.s32.totalorder %s13, 1
      %p120 = por %p118, %p119
      %p121 = scmp.ne.s32.totalorder %s113, %s116
      %p122 = scmp.eq.s32.totalorder %s13, 0
      %p123 = por %p121, %p122
      %p124 = scmp.ne.s32.totalorder %s113, %s116
      %p125 = scmp.eq.s32.totalorder %s18, 1
      %p126 = por %p124, %p125
      %p127 = scmp.ne.s32.totalorder %s116, %s117
      %p128 = scmp.eq.s32.totalorder %s18, 0
      %p129 = por %p127, %p128
      %p130 = scmp.ne.s32.totalorder %s116, %s117
      %p131 = scmp.eq.s32.totalorder %s19, 1
      %p132 = por %p130, %p131
      %p134 = scmp.ne.s32.totalorder %s117, %s133
      %p135 = scmp.eq.s32.totalorder %s19, 0
      %p136 = por %p134, %p135
      %s137 = ssub.s32 %s20, %s32
      %s138 = ssub.s32 %s21, %s28
      %s139 = sor.u32 %s137, %s138
      %p140 = scmp.eq.s32.totalorder %s139, 0
      %s142 = sadd.s32 %s141, 1
      %s143 = scalar_select %p140, %s141, %s142
      %p146 = pneg %p140
      %p147 = scmp.eq.s32.totalorder %s13, 1
      %p148 = por %p146, %p147
      %p149 = scmp.ne.s32.totalorder %s141, %s144
      %p150 = scmp.eq.s32.totalorder %s13, 0
      %p151 = por %p149, %p150
      %p152 = scmp.ne.s32.totalorder %s141, %s144
      %p153 = scmp.eq.s32.totalorder %s18, 1
      %p154 = por %p152, %p153
      %p155 = scmp.ne.s32.totalorder %s144, %s145
      %p156 = scmp.eq.s32.totalorder %s18, 0
      %p157 = por %p155, %p156
      %p158 = scmp.ne.s32.totalorder %s144, %s145
      %p159 = scmp.eq.s32.totalorder %s19, 1
      %p160 = por %p158, %p159
      %p162 = scmp.ne.s32.totalorder %s145, %s161
      %p163 = scmp.eq.s32.totalorder %s19, 0
      %p164 = por %p162, %p163
      %p165 = scmp.le.s32.totalorder 1, %s13
      %p166 = scmp.lt.s32.totalorder %s13, 3
      %p167 = pnand %p165, %p166
      %p168 = pneg %p167
      // Predicated region
      $region9: #{tpu_custom_call.1} parent=5 // pred_check
        _
      $region10: #{tpu_custom_call.1} parent=5 // pred_check_branch
        %170 = sbr.rel (%p167) target = $region12
      $region11: #{tpu_custom_call.1} parent=5 // pred_region
        %s171 = ssub.s32 %s13, 1
        // Predicated region
        $region13: #{tpu_custom_call.1} parent=11 // pred_check
          %p172 = pneg %p77
        $region14: #{tpu_custom_call.1} parent=11 // pred_check_branch
          %174 = sbr.rel (%p172) target = $region16
        $region15: #{tpu_custom_call.1} parent=11 // pred_region
          %p175 = scmp.lt.s32.totalorder %s23, 0
          %s176 = scalar_select %p175, %s23, 0
          %s177 = smul.addr %s176, 8
          %s178 = scalar_lea.vmem %s1, %s177
        $region16: #{tpu_custom_call.1} parent=11 // pred_fallthru
          _
        // Predicated region
        $region17: #{tpu_custom_call.1} parent=11 // pred_check
          %p179 = pneg %p129
        $region18: #{tpu_custom_call.1} parent=11 // pred_check_branch
          %181 = sbr.rel (%p179) target = $region20
        $region19: #{tpu_custom_call.1} parent=11 // pred_region
          %p182 = scmp.lt.s32.totalorder %s23, 0
          %s183 = scalar_select %p182, %s23, 0
          %s184 = scalar_lea.vmem %s3, %s183
        $region20: #{tpu_custom_call.1} parent=11 // pred_fallthru
          _
      $region12: #{tpu_custom_call.1} parent=5 // pred_fallthru
        _
      %p185 = scmp.lt.s32.totalorder %s13, 2
      // Predicated region
      $region21: #{tpu_custom_call.1} parent=5 // pred_check
        %p186 = pneg %p185
      $region22: #{tpu_custom_call.1} parent=5 // pred_check_branch
        %188 = sbr.rel (%p186) target = $region24
      $region23: #{tpu_custom_call.1} parent=5 // pred_region
        // Predicated region
        $region25: #{tpu_custom_call.1} parent=23 // pred_check
          %p189 = pneg %p45
        $region26: #{tpu_custom_call.1} parent=23 // pred_check_branch
          %191 = sbr.rel (%p189) target = $region28
        $region27: #{tpu_custom_call.1} parent=23 // pred_region
          %p192 = scmp.lt.s32.totalorder %s20, 1
          %s193 = scalar_select %p192, %s20, 1
          %s194 = smul.addr %s193, 8
          %s195 = scalar_lea.vmem %s0, %s194
        $region28: #{tpu_custom_call.1} parent=23 // pred_fallthru
          _
        // Predicated region
        $region29: #{tpu_custom_call.1} parent=23 // pred_check
          %p196 = pneg %p97
        $region30: #{tpu_custom_call.1} parent=23 // pred_check_branch
          %198 = sbr.rel (%p196) target = $region32
        $region31: #{tpu_custom_call.1} parent=23 // pred_region
          %p199 = scmp.lt.s32.totalorder %s20, 1
          %s200 = scalar_select %p199, %s20, 1
          %s201 = smul.addr %s200, 8
          %s202 = scalar_lea.vmem %s2, %s201
        $region32: #{tpu_custom_call.1} parent=23 // pred_fallthru
          _
      $region24: #{tpu_custom_call.1} parent=5 // pred_fallthru
        _
      %p203 = scmp.le.s32.totalorder 1, %s13
      %p204 = scmp.lt.s32.totalorder %s13, 3
      %p205 = pnand %p203, %p204
      %p206 = pneg %p205
      // Predicated region
      $region33: #{tpu_custom_call.1} parent=5 // pred_check
        _
      $region34: #{tpu_custom_call.1} parent=5 // pred_check_branch
        %208 = sbr.rel (%p205) target = $region36
      $region35: #{tpu_custom_call.1} parent=5 // pred_region
        %s209 = ssub.s32 %s13, 1
        %p210 = scmp.lt.s32.totalorder %s22, 1
        %s211 = scalar_select %p210, %s22, 1
        %s212 = smul.addr %s211, 8
        %s213 = scalar_lea.vmem %s0, %s212
        %p214 = pneg %p51
        %p215 = pneg %p48
        %p216 = scmp.lt.s32.totalorder %s23, 0
        %s217 = scalar_select %p216, %s23, 0
        %s218 = smul.addr %s217, 8
        %s219 = scalar_lea.vmem %s1, %s218
        %p220 = pneg %p77
        %p221 = pneg %p74
        %p222 = scmp.lt.s32.totalorder %s22, 1
        %s223 = scalar_select %p222, %s22, 1
        %s224 = smul.addr %s223, 8
        %s225 = scalar_lea.vmem %s2, %s224
        %p226 = pneg %p103
        %p227 = pneg %p100
        %p228 = scmp.lt.s32.totalorder %s23, 0
        %s229 = scalar_select %p228, %s23, 0
        %s230 = scalar_lea.vmem %s3, %s229
        %p231 = pneg %p129
        %p232 = pneg %p126
        %p233 = pneg %p157
        %p234 = pneg %p154
        %s235 = sand.u32 %s144, 1
        %s236 = scalar_lea.sflag [#allocation3], %s235
        %s237 = sand.u32 %s144, 1
        %s238 = smul.addr %s237, 8
        %s239 = scalar_lea.vmem [#allocation2], %s238
        %p240 = scmp.lt.s32.totalorder %s22, 1
        %s241 = scalar_select %p240, %s22, 1
        %s242 = smul.addr %s241, 8
        %s243 = scalar_lea.vmem %s0, %s242
        %p244 = scmp.lt.s32.totalorder %s23, 0
        %s245 = scalar_select %p244, %s23, 0
        %s246 = smul.addr %s245, 8
        %s247 = scalar_lea.vmem %s1, %s246
        %p248 = scmp.lt.s32.totalorder %s22, 1
        %s249 = scalar_select %p248, %s22, 1
        %s250 = smul.addr %s249, 8
        %s251 = scalar_lea.vmem %s2, %s250
        %p252 = scmp.lt.s32.totalorder %s23, 0
        %s253 = scalar_select %p252, %s23, 0
        %s254 = scalar_lea.vmem %s3, %s253
        %v255 = vld [vmem:[%s243] sm:$0xff]
        %v256 = vld [vmem:[%s247] sm:$0xff]
        %v257 = vld [vmem:[%s251] sm:$0xff]
        %259 = vset.pattern.permute.xlu0 0
        %260 = vperm.xlu0 %259, %v257
        %v261 = vpop.permute.xlu0 %260
        %vm263 = vcmask 64512
        %v265 = vsel %vm263, %v255, 0
        %267 = vmatprep.subr.mxu0 0.0
        %268 = vmatpush1.msra.mxu0 0.0
        %269 = vmatprep.subr.mxu0 0.0
        %270 = vmatpush1.msra.mxu0 0.0
        %271 = vmatprep.subr.mxu0 0.0
        %272 = vmatpush1.msra.mxu0 0.0
        %273 = vmatprep.subr.mxu0 0.0
        %274 = vmatpush1.msra.mxu0 0.0
        %275 = vmatprep.subr.mxu0 0.0
        %276 = vmatpush1.msra.mxu0 0.0
        %277 = vmatprep.subr.mxu0 0.0
        %278 = vmatpush1.msra.mxu0 0.0
        %279 = vmatprep.subr.mxu0 0.0
        %280 = vmatpush1.msra.mxu0 0.0
        %281 = vmatprep.subr.mxu0 0.0
        %282 = vmatpush1.msra.mxu0 0.0
        %283 = vmatprep.subr.mxu0 0.0
        %284 = vmatpush1.msra.mxu0 0.0
        %285 = vmatprep.subr.mxu0 0.0
        %286 = vmatpush1.msra.mxu0 0.0
        %287 = vmatprep.subr.mxu0 0.0
        %288 = vmatpush1.msra.mxu0 0.0
        %289 = vmatprep.subr.mxu0 0.0
        %290 = vmatpush1.msra.mxu0 0.0
        %291 = vmatprep.subr.mxu0 0.0
        %292 = vmatpush1.msra.mxu0 0.0
        %293 = vmatprep.subr.mxu0 0.0
        %294 = vmatpush1.msra.mxu0 0.0
        %295 = vmatprep.subr.mxu0 0.0
        %296 = vmatpush1.msra.mxu0 0.0
        %297 = vmatprep.subr.mxu0 0.0
        %298 = vmatpush1.msra.mxu0 %v256
        %299 = vmatprep.subr.mxu0 0.0
        %300 = vmatpush2.msra.mxu0 0.0
        %301 = vmatprep.subr.mxu0 0.0
        %302 = vmatpush2.msra.mxu0 0.0
        %303 = vmatprep.subr.mxu0 0.0
        %304 = vmatpush2.msra.mxu0 0.0
        %305 = vmatprep.subr.mxu0 0.0
        %306 = vmatpush2.msra.mxu0 0.0
        %307 = vmatprep.subr.mxu0 0.0
        %308 = vmatpush2.msra.mxu0 0.0
        %309 = vmatprep.subr.mxu0 0.0
        %310 = vmatpush2.msra.mxu0 0.0
        %311 = vmatprep.subr.mxu0 0.0
        %312 = vmatpush2.msra.mxu0 0.0
        %313 = vmatprep.subr.mxu0 0.0
        %314 = vmatpush2.msra.mxu0 0.0
        %315 = vmatprep.subr.mxu0 0.0
        %316 = vmatpush2.msra.mxu0 0.0
        %317 = vmatprep.subr.mxu0 0.0
        %318 = vmatpush2.msra.mxu0 0.0
        %319 = vmatprep.subr.mxu0 0.0
        %320 = vmatpush2.msra.mxu0 0.0
        %321 = vmatprep.subr.mxu0 0.0
        %322 = vmatpush2.msra.mxu0 0.0
        %323 = vmatprep.subr.mxu0 0.0
        %324 = vmatpush2.msra.mxu0 0.0
        %325 = vmatprep.subr.mxu0 0.0
        %326 = vmatpush2.msra.mxu0 0.0
        %327 = vmatprep.subr.mxu0 0.0
        %328 = vmatpush2.msra.mxu0 0.0
        %329 = vmatprep.subr.mxu0 0.0
        %330 = vmatpush2.msra.mxu0 0.0
        %331 = vmatprep.mubr.f32.mxu0 0.0
        %332 = vmatmul.mubr.f32.gmra.mxu0 %v265
        %v333 = vpop.f32.mrf.mxu0
        %v334 = vadd.f32 %v261, %v333
        %v335 = vpop.f32.mrf.mxu0
        %336 = vdwg.mxu0
        %v337 = vld [vmem:[%s254] sm:$0x1]
        %v339 = vlaneseq
        %v340 = vshrl.u32 %v339, 7
        %v341 = vsub.s32 0, %v340
        %v342 = vrot.slane %v337, %v341
        %v344 = vadd.f32 %v334, %v342
        %v345 = vmul.f32 %v344, 1.442695
        %v346 = vpow.pop %v345
        %347 = vst [vmem:[%s239] sm:$0xff] %v346
        %s348 = sand.u32 %s144, 1
        %s349 = scalar_lea.sflag [#allocation3], %s348
        %s350 = sand.u32 %s144, 1
        %s351 = smul.addr %s350, 8
        %s352 = scalar_lea.vmem [#allocation2], %s351
        // Predicated region
        $region37: #{tpu_custom_call.1} parent=35 // pred_check
          %p353 = pneg %p154
        $region38: #{tpu_custom_call.1} parent=35 // pred_check_branch
          %355 = sbr.rel (%p353) target = $region40
        $region39: #{tpu_custom_call.1} parent=35 // pred_region
          %s357 = ssub.s32 128, 128
          %358 = vsyncadd %s349, %s357
          %s359 = sadd.s32 %s23, %s22
          %s360 = smul.addr %s359, 128
          %s361 = scalar_lea.hbm %s4, %s360
          %s363 = sshll.u32 %s352, 4
          %s364 = int_to_ptr.vmem [resolvable:$true] %s363
          %366 = dma.vmem_to_hbm [thread:$0]  %s364, 128, %s361, %s349
        $region40: #{tpu_custom_call.1} parent=35 // pred_fallthru
          _
      $region36: #{tpu_custom_call.1} parent=5 // pred_fallthru
        _
      %p367 = scmp.le.s32.totalorder 2, %s13
      // Predicated region
      $region41: #{tpu_custom_call.1} parent=5 // pred_check
        %p368 = pneg %p367
      $region42: #{tpu_custom_call.1} parent=5 // pred_check_branch
        %370 = sbr.rel (%p368) target = $region44
      $region43: #{tpu_custom_call.1} parent=5 // pred_region
        %s371 = ssub.s32 %s13, 2
        // Predicated region
        $region45: #{tpu_custom_call.1} parent=43 // pred_check
          %p372 = pneg %p160
        $region46: #{tpu_custom_call.1} parent=43 // pred_check_branch
          %374 = sbr.rel (%p372) target = $region48
        $region47: #{tpu_custom_call.1} parent=43 // pred_region
          %s375 = sand.u32 %s145, 1
          %s376 = scalar_lea.sflag [#allocation3], %s375
          %s377 = sand.u32 %s145, 1
          %s378 = smul.addr %s377, 8
          %s379 = scalar_lea.vmem [#allocation2], %s378
          %380 = dma.done %s376, 128
        $region48: #{tpu_custom_call.1} parent=43 // pred_fallthru
          _
      $region44: #{tpu_custom_call.1} parent=5 // pred_fallthru
        _
    $region6: #{tpu_custom_call.1} parent=1 // loop_footer
      %s17 = sadd.s32 1, %s13
    $region7: #{tpu_custom_call.1} parent=1 // loop_footer_branch
      %12 = sbr.rel target = $region3
    $region8: #{tpu_custom_call.1} parent=1 // loop_exit
      _
    %381 = vsyncpa [#allocation3], 1
    %s382 = scalar_lea.sflag [#allocation3], 1
    %383 = vsyncpa %s382, 1

</llo_original>
